<compile_context>
chip_gen: v7x
topology: tpu7x:2x2x1
jax: 0.10.0
libtpu: 0.0.40
codegen_flags: <defaults>
</compile_context>

<pallas_src>
import jax
import jax.numpy as jnp
from jax.experimental import pallas as pl
from jax.experimental.pallas import tpu as pltpu


# ------------------------------ Pallas kernel ------------------------------ #
def _se_block_kernel(x_ref, w1t_ref, w2t_ref, o_ref):
    x = x_ref[...]                                            # (BT, C, W)
    # Squeeze: global sum over the spatial axis (1/W is folded into w1t).
    pooled = jnp.sum(x.astype(jnp.float32), axis=-1)          # (BT, C)
    # Excitation MLP, bias-free, batched across the whole tile.
    h = jnp.dot(pooled, w1t_ref[...],
                preferred_element_type=jnp.float32)           # (BT, Cr)
    h = jnp.maximum(h, 0.0)
    y = jnp.dot(h, w2t_ref[...],
                preferred_element_type=jnp.float32)           # (BT, C)
    y = jax.nn.sigmoid(y)
    # Scale: broadcast the per-(batch, channel) gate over W.
    o_ref[...] = (x * y[:, :, None].astype(x.dtype)).astype(o_ref.dtype)


def se_block(x, w1, w2):
    """x: (B, C, W); w1: (C//r, C); w2: (C, C//r)  ->  (B, C, W).

    w1/w2 are in PyTorch nn.Linear (out_features, in_features) layout.
    """
    B, C, W = x.shape
    Cr, C_in = w1.shape
    assert C_in == C and w2.shape == (C, Cr), (w1.shape, w2.shape, x.shape)

    # Host-side (tiny) weight prep: fold 1/W of the mean into FC1 and
    # pre-transpose both weights so the kernel contracts without transposes.
    w1t = (w1 * (1.0 / float(W))).T.astype(jnp.float32)       # (C, Cr)
    w2t = w2.T.astype(jnp.float32)                            # (Cr, C)

    # ----- batch-tile selection ------------------------------------------- #
    slab = C * W * x.dtype.itemsize                  # one batch element, bytes
    vmem_budget = 32 * 1024 * 1024                   # in+out, double-buffered
    bt = max(1, min(B, vmem_budget // (4 * slab)))
    if B >= 2:
        bt = min(bt, -(-B // 2))                     # keep >= 2 steps (v7x 2 TCs)
    while B % bt:                                    # exact tiling of the batch
        bt -= 1
    grid = (B // bt,)

    w_bytes = (w1t.size + w2t.size) * 4
    vmem_limit = int(min(48 * 1024 * 1024,
                         max(4 * bt * slab + 4 * w_bytes + (2 << 20),
                             16 * 1024 * 1024)))

    flops = B * (2 * C * W + 4 * C * Cr)             # pool + 2 matmuls + scale
    bytes_accessed = 2 * B * C * W * x.dtype.itemsize + 2 * w_bytes

    return pl.pallas_call(
        _se_block_kernel,
        out_shape=jax.ShapeDtypeStruct((B, C, W), x.dtype),
        grid_spec=pl.GridSpec(
            grid=grid,
            in_specs=[
                pl.BlockSpec((bt, C, W), lambda b: (b, 0, 0)),   # x slab
                pl.BlockSpec((C, Cr), lambda b: (0, 0)),         # fc1^T (resident)
                pl.BlockSpec((Cr, C), lambda b: (0, 0)),         # fc2^T (resident)
            ],
            out_specs=pl.BlockSpec((bt, C, W), lambda b: (b, 0, 0)),
        ),
        compiler_params=pltpu.CompilerParams(
            dimension_semantics=("parallel",),
            vmem_limit_bytes=vmem_limit),
        cost_estimate=pl.CostEstimate(
            flops=flops, transcendentals=B * C, bytes_accessed=bytes_accessed),
    )(x, w1t, w2t)


# --------------------------- pure-JAX reference ---------------------------- #
def se_block_ref(x, w1, w2):
    y = jnp.mean(x, axis=-1)                       # (B, C)
    y = jnp.maximum(y @ w1.T, 0.0)                 # (B, C//r)
    y = jax.nn.sigmoid(y @ w2.T)                   # (B, C)
    return x * y[:, :, None]


# ------------------------------ param init --------------------------------- #
def init_se_params(key, channels, reduction):
    """PyTorch Linear(bias=False) default init: U(-1/sqrt(fan_in), +)."""
    cr = channels // reduction
    k1, k2 = jax.random.split(key)
    b1 = 1.0 / jnp.sqrt(float(channels))
    b2 = 1.0 / jnp.sqrt(float(cr))
    w1 = jax.random.uniform(k1, (cr, channels), jnp.float32, -b1, b1)
    w2 = jax.random.uniform(k2, (channels, cr), jnp.float32, -b2, b2)
    return w1, w2


# ---------------------------------- main ------------------------------------ #
if __name__ == "__main__":
    batch = 4
    channels = 64
    reduction = 16
    spatial = 128          # lane-dense last dim

    root = jax.random.PRNGKey(0)
    k_x, k_w = jax.random.split(root)
    x = jax.random.normal(k_x, (batch, channels, spatial), dtype=jnp.float32)
    w1, w2 = init_se_params(k_w, channels, reduction)

    fwd = jax.jit(se_block)
    out = fwd(x, w1, w2)
    jax.block_until_ready(out)

    ref = se_block_ref(x, w1, w2)
    assert out.shape == (batch, channels, spatial)
    assert jnp.allclose(out, ref, atol=1e-5, rtol=1e-4), \
        float(jnp.max(jnp.abs(out - ref)))
    print("KERNEL_OK")
</pallas_src>

<mosaic_0001>
module attributes {stable_mosaic.version = 11 : i64} {
  func.func @_se_block_kernel(%arg0: i32, %arg1: memref<2x64x128xf32, #tpu.memory_space<vmem>>, %arg2: memref<64x4xf32, #tpu.memory_space<vmem>>, %arg3: memref<4x64xf32, #tpu.memory_space<vmem>>, %arg4: memref<2x64x128xf32, #tpu.memory_space<vmem>>) attributes {dimension_semantics = [#tpu.dimension_semantics<parallel>], iteration_bounds = array<i64: 2>, scalar_prefetch = 0 : i64, scratch_operands = 0 : i64, tpu.core_type = #tpu.core_type<tc>, window_params = [{transform_indices = @transform_0, window_bounds = array<i64: 2, 64, 128>}, {pipeline_mode = #tpu.pipeline_mode<synchronous>, transform_indices = @transform_1, window_bounds = array<i64: 64, 4>}, {pipeline_mode = #tpu.pipeline_mode<synchronous>, transform_indices = @transform_2, window_bounds = array<i64: 4, 64>}, {transform_indices = @transform_3, window_bounds = array<i64: 2, 64, 128>}]} {
    %c0 = arith.constant 0 : index
    %c0_0 = arith.constant 0 : index
    %c0_1 = arith.constant 0 : index
    %0 = vector.load %arg1[%c0, %c0_0, %c0_1] : memref<2x64x128xf32, #tpu.memory_space<vmem>>, vector<2x64x128xf32>
    %cst = arith.constant dense<0.000000e+00> : vector<2x64xf32>
    %1 = vector.multi_reduction <add>, %0, %cst [2] : vector<2x64x128xf32> to vector<2x64xf32>
    %c0_2 = arith.constant 0 : index
    %c0_3 = arith.constant 0 : index
    %2 = vector.load %arg2[%c0_2, %c0_3] : memref<64x4xf32, #tpu.memory_space<vmem>>, vector<64x4xf32>
    %cst_4 = arith.constant dense<0.000000e+00> : vector<2x4xf32>
    %3 = tpu.matmul %1, %2, %cst_4 {dimension_numbers = #tpu.dot_dimension_numbers<[1], [0], [0], [1], [0, 0, 1, 1], [], []>} : vector<2x64xf32>, vector<64x4xf32>, vector<2x4xf32> -> vector<2x4xf32>
    %cst_5 = arith.constant 0.000000e+00 : f32
    %4 = vector.broadcast %cst_5 : f32 to vector<2x4xf32>
    %5 = arith.maximumf %3, %4 : vector<2x4xf32>
    %c0_6 = arith.constant 0 : index
    %c0_7 = arith.constant 0 : index
    %6 = vector.load %arg3[%c0_6, %c0_7] : memref<4x64xf32, #tpu.memory_space<vmem>>, vector<4x64xf32>
    %cst_8 = arith.constant dense<0.000000e+00> : vector<2x64xf32>
    %7 = tpu.matmul %5, %6, %cst_8 {dimension_numbers = #tpu.dot_dimension_numbers<[1], [0], [0], [1], [0, 0, 1, 1], [], []>} : vector<2x4xf32>, vector<4x64xf32>, vector<2x64xf32> -> vector<2x64xf32>
    %8 = arith.negf %7 : vector<2x64xf32>
    %9 = math.exp %8 : vector<2x64xf32>
    %cst_9 = arith.constant 1.000000e+00 : f32
    %10 = vector.broadcast %cst_9 : f32 to vector<2x64xf32>
    %11 = arith.addf %10, %9 : vector<2x64xf32>
    %12 = arith.divf %10, %11 : vector<2x64xf32>
    %13 = vector.shape_cast %12 : vector<2x64xf32> to vector<2x64x1xf32>
    %14 = vector.broadcast %13 : vector<2x64x1xf32> to vector<2x64x128xf32>
    %15 = arith.mulf %0, %14 : vector<2x64x128xf32>
    %c0_10 = arith.constant 0 : index
    %c0_11 = arith.constant 0 : index
    %c0_12 = arith.constant 0 : index
    %16 = vector.load %arg4[%c0_10, %c0_11, %c0_12] : memref<2x64x128xf32, #tpu.memory_space<vmem>>, vector<2x64x128xf32>
    tpu.vector_store %arg4[%c0_10, %c0_11, %c0_12], %15 {strides = array<i32>} : memref<2x64x128xf32, #tpu.memory_space<vmem>>, vector<2x64x128xf32>,
    return
  }
  func.func @transform_0(%arg0: i32) -> (i32, i32, i32) {
    %c0_i32 = arith.constant 0 : i32
    %c0_i32_0 = arith.constant 0 : i32
    %c0_i32_1 = arith.constant 0 : i32
    return %arg0, %c0_i32, %c0_i32_0 : i32, i32, i32
  }
  func.func @transform_1(%arg0: i32) -> (i32, i32) {
    %c0_i32 = arith.constant 0 : i32
    %c0_i32_0 = arith.constant 0 : i32
    %c0_i32_1 = arith.constant 0 : i32
    return %c0_i32, %c0_i32_0 : i32, i32
  }
  func.func @transform_2(%arg0: i32) -> (i32, i32) {
    %c0_i32 = arith.constant 0 : i32
    %c0_i32_0 = arith.constant 0 : i32
    %c0_i32_1 = arith.constant 0 : i32
    return %c0_i32, %c0_i32_0 : i32, i32
  }
  func.func @transform_3(%arg0: i32) -> (i32, i32, i32) {
    %c0_i32 = arith.constant 0 : i32
    %c0_i32_0 = arith.constant 0 : i32
    %c0_i32_1 = arith.constant 0 : i32
    return %arg0, %c0_i32, %c0_i32_0 : i32, i32, i32
  }
}

</mosaic_0001>

<llo_original>
// kernel: se_block.1
$region0: #{se_block.1}
  #allocation0 [shape = 'u32[]', space=smem, size = 0x4, offset = 0x4, fixed_abs, tag = 'smem constant byte address 0x4 - core index']
  #allocation1 [shape = 'u32[144,128]{1,0:T(1,128)}', space=vmem, size = 0x12000, scoped, tag = 'internal scratch']
  %s0 = inlined_call_operand.hbm [shape: f32[4,64,128], index: 0, kind: input, shape index: {}]
  %s1 = inlined_call_operand.vmem [shape: f32[64,4], index: 1, kind: input, shape index: {}]
  %s2 = inlined_call_operand.vmem [shape: f32[4,64], index: 2, kind: input, shape index: {}]
  %s3 = inlined_call_operand.hbm [shape: f32[4,64,128], index: 3, kind: output, shape index: {}]
  %s4 = sld [smem:[#allocation0]]
  $region49: #{se_block.1} parent=0
    _
  %s6 = ssub.s32 1, %s4
  %s7 = scalar_select 0, %s6, %s4
  $region1: #{se_block.1} parent=0
    #allocation2 [shape = 'u8[131072]{0}', space=vmem, size = 0x20000, scoped, tag = 'input window, operand 0']
    #allocation3 [shape = 's32[2]{0}', space=sflag, size = 0x8, scoped, tag = 'scoped memory for se_block.1']
    #allocation4 [shape = 's32[2]{0}', space=sflag, size = 0x8, scoped, tag = 'scoped memory for se_block.1']
    #allocation5 [shape = 'u8[131072]{0}', space=vmem, size = 0x20000, scoped, tag = 'output window, operand 0']
    %8 = vsyncpa [#allocation3], 0
    %s9 = scalar_lea.sflag [#allocation3], 1
    %10 = vsyncpa %s9, 0
    %11 = vsyncpa [#allocation4], 0
    %s12 = scalar_lea.sflag [#allocation4], 1
    %13 = vsyncpa %s12, 0
    loop: start=0, step=1, limit=4
    $region2: #{se_block.1} parent=1 // loop_pre_header
      _
    $region3: #{se_block.1} parent=1 // loop_header
      %s15 = sphi 0, %s19
      %p16 = scmp.ge.s32.totalorder %s15, 4
      %s25 = sphi 0, %s27
      %s28 = sphi 0, %s25
      %s29 = sphi 0, %s28
      %s45 = sphi 0, %s29
      %s49 = sphi 0, %s49
      %s51 = sphi 0, %s49
      %s52 = sphi 0, %s51
      %s66 = sphi 0, %s52
      %s70 = sphi 0, %s70
      %s72 = sphi 0, %s70
      %s73 = sphi 0, %s72
      %s87 = sphi 0, %s73
      %s93 = sphi 0, %s95
      %s96 = sphi 0, %s93
      %s97 = sphi 0, %s96
      %s113 = sphi 0, %s97
    $region4: #{se_block.1} parent=1 // loop_header_branch
      %18 = sbr.rel (%p16) target = $region8
    $region5: #{se_block.1} parent=1 // loop_body
      %s20 = ssub.s32 %s15, 1
      %s21 = ssub.s32 %s15, 2
      %s22 = sadd.s32 %s15, 1
      %s23 = ssub.s32 %s15, %s22
      %p24 = scmp.eq.s32.totalorder %s23, 0
      %s26 = sadd.s32 %s25, 1
      %s27 = scalar_select %p24, %s25, %s26
      %p30 = pneg %p24
      %p31 = scmp.eq.s32.totalorder %s15, 1
      %p32 = por %p30, %p31
      %p33 = scmp.ne.s32.totalorder %s25, %s28
      %p34 = scmp.eq.s32.totalorder %s15, 0
      %p35 = por %p33, %p34
      %p36 = scmp.ne.s32.totalorder %s25, %s28
      %p37 = scmp.eq.s32.totalorder %s20, 1
      %p38 = por %p36, %p37
      %p39 = scmp.ne.s32.totalorder %s28, %s29
      %p40 = scmp.eq.s32.totalorder %s20, 0
      %p41 = por %p39, %p40
      %p42 = scmp.ne.s32.totalorder %s28, %s29
      %p43 = scmp.eq.s32.totalorder %s21, 1
      %p44 = por %p42, %p43
      %p46 = scmp.ne.s32.totalorder %s29, %s45
      %p47 = scmp.eq.s32.totalorder %s21, 0
      %p48 = por %p46, %p47
      %s50 = sadd.s32 %s49, 1
      %p53 = scmp.eq.s32.totalorder %s15, 1
      %p54 = scmp.ne.s32.totalorder %s49, %s51
      %p55 = scmp.eq.s32.totalorder %s15, 0
      %p56 = por %p54, %p55
      %p57 = scmp.ne.s32.totalorder %s49, %s51
      %p58 = scmp.eq.s32.totalorder %s20, 1
      %p59 = por %p57, %p58
      %p60 = scmp.ne.s32.totalorder %s51, %s52
      %p61 = scmp.eq.s32.totalorder %s20, 0
      %p62 = por %p60, %p61
      %p63 = scmp.ne.s32.totalorder %s51, %s52
      %p64 = scmp.eq.s32.totalorder %s21, 1
      %p65 = por %p63, %p64
      %p67 = scmp.ne.s32.totalorder %s52, %s66
      %p68 = scmp.eq.s32.totalorder %s21, 0
      %p69 = por %p67, %p68
      %s71 = sadd.s32 %s70, 1
      %p74 = scmp.eq.s32.totalorder %s15, 1
      %p75 = scmp.ne.s32.totalorder %s70, %s72
      %p76 = scmp.eq.s32.totalorder %s15, 0
      %p77 = por %p75, %p76
      %p78 = scmp.ne.s32.totalorder %s70, %s72
      %p79 = scmp.eq.s32.totalorder %s20, 1
      %p80 = por %p78, %p79
      %p81 = scmp.ne.s32.totalorder %s72, %s73
      %p82 = scmp.eq.s32.totalorder %s20, 0
      %p83 = por %p81, %p82
      %p84 = scmp.ne.s32.totalorder %s72, %s73
      %p85 = scmp.eq.s32.totalorder %s21, 1
      %p86 = por %p84, %p85
      %p88 = scmp.ne.s32.totalorder %s73, %s87
      %p89 = scmp.eq.s32.totalorder %s21, 0
      %p90 = por %p88, %p89
      %s91 = ssub.s32 %s15, %s22
      %p92 = scmp.eq.s32.totalorder %s91, 0
      %s94 = sadd.s32 %s93, 1
      %s95 = scalar_select %p92, %s93, %s94
      %p98 = pneg %p92
      %p99 = scmp.eq.s32.totalorder %s15, 1
      %p100 = por %p98, %p99
      %p101 = scmp.ne.s32.totalorder %s93, %s96
      %p102 = scmp.eq.s32.totalorder %s15, 0
      %p103 = por %p101, %p102
      %p104 = scmp.ne.s32.totalorder %s93, %s96
      %p105 = scmp.eq.s32.totalorder %s20, 1
      %p106 = por %p104, %p105
      %p107 = scmp.ne.s32.totalorder %s96, %s97
      %p108 = scmp.eq.s32.totalorder %s20, 0
      %p109 = por %p107, %p108
      %p110 = scmp.ne.s32.totalorder %s96, %s97
      %p111 = scmp.eq.s32.totalorder %s21, 1
      %p112 = por %p110, %p111
      %p114 = scmp.ne.s32.totalorder %s97, %s113
      %p115 = scmp.eq.s32.totalorder %s21, 0
      %p116 = por %p114, %p115
      %p117 = scmp.le.s32.totalorder 1, %s15
      %p118 = scmp.lt.s32.totalorder %s15, 3
      %p119 = pnand %p117, %p118
      %p120 = pneg %p119
      // Predicated region
      $region9: #{se_block.1} parent=5 // pred_check
        _
      $region10: #{se_block.1} parent=5 // pred_check_branch
        %122 = sbr.rel (%p119) target = $region12
      $region11: #{se_block.1} parent=5 // pred_region
        %s123 = ssub.s32 %s15, 1
        // Predicated region
        $region13: #{se_block.1} parent=11 // pred_check
          %p124 = pneg %p62
        $region14: #{se_block.1} parent=11 // pred_check_branch
          %126 = sbr.rel (%p124) target = $region16
        $region15: #{se_block.1} parent=11 // pred_region
          _
        $region16: #{se_block.1} parent=11 // pred_fallthru
          _
        // Predicated region
        $region17: #{se_block.1} parent=11 // pred_check
          %p127 = pneg %p83
        $region18: #{se_block.1} parent=11 // pred_check_branch
          %129 = sbr.rel (%p127) target = $region20
        $region19: #{se_block.1} parent=11 // pred_region
          _
        $region20: #{se_block.1} parent=11 // pred_fallthru
          _
      $region12: #{se_block.1} parent=5 // pred_fallthru
        _
      %p130 = scmp.lt.s32.totalorder %s15, 2
      // Predicated region
      $region21: #{se_block.1} parent=5 // pred_check
        %p131 = pneg %p130
      $region22: #{se_block.1} parent=5 // pred_check_branch
        %133 = sbr.rel (%p131) target = $region24
      $region23: #{se_block.1} parent=5 // pred_region
        // Predicated region
        $region25: #{se_block.1} parent=23 // pred_check
          %p134 = pneg %p35
        $region26: #{se_block.1} parent=23 // pred_check_branch
          %136 = sbr.rel (%p134) target = $region28
        $region27: #{se_block.1} parent=23 // pred_region
          %s137 = sand.u32 %s25, 1
          %s138 = scalar_lea.sflag [#allocation3], %s137
          %s139 = sand.u32 %s25, 1
          %s140 = smul.addr %s139, 128
          %s141 = scalar_lea.vmem [#allocation2], %s140
          %s142 = smul.u32 2, %s15
          %s144 = ssub.s32 2048, 2048
          %145 = vsyncadd %s138, %s144
          %s146 = smul.addr %s142, 8
          %s147 = smul.addr %s146, 128
          %s148 = scalar_lea.hbm %s0, %s147
          %s149 = sshll.u32 %s141, 4
          %s150 = int_to_ptr.vmem [resolvable:$true] %s149
          %155 = dma.hbm_to_vmem [thread:$0]  %s148, 2048, %s150, %s138, 128, 128, 8
        $region28: #{se_block.1} parent=23 // pred_fallthru
          _
      $region24: #{se_block.1} parent=5 // pred_fallthru
        _
      %p156 = scmp.le.s32.totalorder 1, %s15
      %p157 = scmp.lt.s32.totalorder %s15, 3
      %p158 = pnand %p156, %p157
      %p159 = pneg %p158
      // Predicated region
      $region29: #{se_block.1} parent=5 // pred_check
        _
      $region30: #{se_block.1} parent=5 // pred_check_branch
        %161 = sbr.rel (%p158) target = $region32
      $region31: #{se_block.1} parent=5 // pred_region
        %s162 = ssub.s32 %s15, 1
        %s163 = sand.u32 %s28, 1
        %s164 = scalar_lea.sflag [#allocation3], %s163
        %s165 = sand.u32 %s28, 1
        %s166 = smul.addr %s165, 128
        %s167 = scalar_lea.vmem [#allocation2], %s166
        // Predicated region
        $region33: #{se_block.1} parent=31 // pred_check
          %p168 = pneg %p41
        $region34: #{se_block.1} parent=31 // pred_check_branch
          %170 = sbr.rel (%p168) target = $region36
        $region35: #{se_block.1} parent=31 // pred_region
          %171 = dma.done %s164, 2048
        $region36: #{se_block.1} parent=31 // pred_fallthru
          _
        %s172 = sand.u32 %s28, 1
        %s173 = scalar_lea.sflag [#allocation3], %s172
        %s174 = sand.u32 %s28, 1
        %s175 = smul.addr %s174, 128
        %s176 = scalar_lea.vmem [#allocation2], %s175
        %p177 = pneg %p41
        %p178 = pneg %p38
        %p179 = pneg %p62
        %p180 = pneg %p59
        %p181 = pneg %p83
        %p182 = pneg %p80
        %p183 = pneg %p109
        %p184 = pneg %p106
        %s185 = sand.u32 %s96, 1
        %s186 = scalar_lea.sflag [#allocation4], %s185
        %s187 = sand.u32 %s96, 1
        %s188 = smul.addr %s187, 128
        %s189 = scalar_lea.vmem [#allocation5], %s188
        %s190 = smul.u32 2, %s20
        %s191 = smul.u32 2, %s20
        %v192 = vld [vmem:[%s167] sm:$0xff]
        %v193 = vld [vmem:[%s167 + $0x8] sm:$0xff]
        %v194 = vld [vmem:[%s167 + $0x10] sm:$0xff]
        %v195 = vld [vmem:[%s167 + $0x18] sm:$0xff]
        %v196 = vld [vmem:[%s167 + $0x20] sm:$0xff]
        %v197 = vld [vmem:[%s167 + $0x28] sm:$0xff]
        %v198 = vld [vmem:[%s167 + $0x30] sm:$0xff]
        %v199 = vld [vmem:[%s167 + $0x38] sm:$0xff]
        %v200 = vld [vmem:[%s167 + $0x40] sm:$0xff]
        %v201 = vld [vmem:[%s167 + $0x48] sm:$0xff]
        %v202 = vld [vmem:[%s167 + $0x50] sm:$0xff]
        %v203 = vld [vmem:[%s167 + $0x58] sm:$0xff]
        %v204 = vld [vmem:[%s167 + $0x60] sm:$0xff]
        %v205 = vld [vmem:[%s167 + $0x68] sm:$0xff]
        %v206 = vld [vmem:[%s167 + $0x70] sm:$0xff]
        %v207 = vld [vmem:[%s167 + $0x78] sm:$0xff]
        %208 = vadd.xlane.f32.xlu0 %v192
        %v209 = vpop.xlane.xlu0 %208
        %210 = vadd.xlane.f32.xlu0 %v193
        %v211 = vpop.xlane.xlu0 %210
        %212 = vadd.xlane.f32.xlu0 %v194
        %v213 = vpop.xlane.xlu0 %212
        %214 = vadd.xlane.f32.xlu0 %v195
        %v215 = vpop.xlane.xlu0 %214
        %216 = vadd.xlane.f32.xlu0 %v196
        %v217 = vpop.xlane.xlu0 %216
        %218 = vadd.xlane.f32.xlu0 %v197
        %v219 = vpop.xlane.xlu0 %218
        %220 = vadd.xlane.f32.xlu0 %v198
        %v221 = vpop.xlane.xlu0 %220
        %222 = vadd.xlane.f32.xlu0 %v199
        %v223 = vpop.xlane.xlu0 %222
        %224 = vadd.xlane.f32.xlu0 %v200
        %v225 = vpop.xlane.xlu0 %224
        %226 = vadd.xlane.f32.xlu0 %v201
        %v227 = vpop.xlane.xlu0 %226
        %228 = vadd.xlane.f32.xlu0 %v202
        %v229 = vpop.xlane.xlu0 %228
        %230 = vadd.xlane.f32.xlu0 %v203
        %v231 = vpop.xlane.xlu0 %230
        %232 = vadd.xlane.f32.xlu0 %v204
        %v233 = vpop.xlane.xlu0 %232
        %234 = vadd.xlane.f32.xlu0 %v205
        %v235 = vpop.xlane.xlu0 %234
        %236 = vadd.xlane.f32.xlu0 %v206
        %v237 = vpop.xlane.xlu0 %236
        %238 = vadd.xlane.f32.xlu0 %v207
        %v239 = vpop.xlane.xlu0 %238
        %v240 = vld [vmem:[%s1] sm:$0xff]
        %v241 = vld [vmem:[%s1 + $0x8] sm:$0xff]
        %v242 = vld [vmem:[%s1 + $0x10] sm:$0xff]
        %v243 = vld [vmem:[%s1 + $0x18] sm:$0xff]
        %v244 = vld [vmem:[%s1 + $0x20] sm:$0xff]
        %v245 = vld [vmem:[%s1 + $0x28] sm:$0xff]
        %v246 = vld [vmem:[%s1 + $0x30] sm:$0xff]
        %v247 = vld [vmem:[%s1 + $0x38] sm:$0xff]
        %v264 = vlaneseq
        %v265 = vand.u32 %v264, 127
        %v266 = vlaneseq
        %v267 = vshrl.u32 %v266, 7
        %v268 = vsub.s32 %v265, %v267
        %v269 = vrot.slane %v209, %v268
        %v270 = vadd.s32 %v265, 4294967288
        %v271 = vlaneseq
        %v272 = vshrl.u32 %v271, 7
        %v273 = vsub.s32 %v270, %v272
        %v274 = vrot.slane %v211, %v273
        %vm275 = vcmask 130112
        %v276 = vsel %vm275, %v274, %v269
        %v277 = vadd.s32 %v265, 4294967280
        %v278 = vlaneseq
        %v279 = vshrl.u32 %v278, 7
        %v280 = vsub.s32 %v277, %v279
        %v281 = vrot.slane %v213, %v280
        %vm282 = vcmask 195712
        %v283 = vsel %vm282, %v281, %v276
        %v284 = vadd.s32 %v265, 4294967272
        %v285 = vlaneseq
        %v286 = vshrl.u32 %v285, 7
        %v287 = vsub.s32 %v284, %v286
        %v288 = vrot.slane %v215, %v287
        %vm289 = vcmask 261312
        %v290 = vsel %vm289, %v288, %v283
        %v291 = vadd.s32 %v265, 4294967264
        %v292 = vlaneseq
        %v293 = vshrl.u32 %v292, 7
        %v294 = vsub.s32 %v291, %v293
        %v295 = vrot.slane %v217, %v294
        %vm296 = vcmask 326912
        %v297 = vsel %vm296, %v295, %v290
        %v298 = vadd.s32 %v265, 4294967256
        %v299 = vlaneseq
        %v300 = vshrl.u32 %v299, 7
        %v301 = vsub.s32 %v298, %v300
        %v302 = vrot.slane %v219, %v301
        %vm303 = vcmask 392512
        %v304 = vsel %vm303, %v302, %v297
        %v305 = vadd.s32 %v265, 4294967248
        %v306 = vlaneseq
        %v307 = vshrl.u32 %v306, 7
        %v308 = vsub.s32 %v305, %v307
        %v309 = vrot.slane %v221, %v308
        %vm310 = vcmask 458112
        %v311 = vsel %vm310, %v309, %v304
        %v312 = vadd.s32 %v265, 4294967240
        %v313 = vlaneseq
        %v314 = vshrl.u32 %v313, 7
        %v315 = vsub.s32 %v312, %v314
        %v316 = vrot.slane %v223, %v315
        %vm317 = vcmask 523712
        %v318 = vsel %vm317, %v316, %v311
        %v319 = vlaneseq
        %v320 = vshrl.u32 %v319, 7
        %v321 = vsub.s32 %v265, %v320
        %v322 = vrot.slane %v225, %v321
        %v323 = vlaneseq
        %v324 = vshrl.u32 %v323, 7
        %v325 = vsub.s32 %v270, %v324
        %v326 = vrot.slane %v227, %v325
        %v327 = vsel %vm275, %v326, %v322
        %v328 = vlaneseq
        %v329 = vshrl.u32 %v328, 7
        %v330 = vsub.s32 %v277, %v329
        %v331 = vrot.slane %v229, %v330
        %v332 = vsel %vm282, %v331, %v327
        %v333 = vlaneseq
        %v334 = vshrl.u32 %v333, 7
        %v335 = vsub.s32 %v284, %v334
        %v336 = vrot.slane %v231, %v335
        %v337 = vsel %vm289, %v336, %v332
        %v338 = vlaneseq
        %v339 = vshrl.u32 %v338, 7
        %v340 = vsub.s32 %v291, %v339
        %v341 = vrot.slane %v233, %v340
        %v342 = vsel %vm296, %v341, %v337
        %v343 = vlaneseq
        %v344 = vshrl.u32 %v343, 7
        %v345 = vsub.s32 %v298, %v344
        %v346 = vrot.slane %v235, %v345
        %v347 = vsel %vm303, %v346, %v342
        %v348 = vlaneseq
        %v349 = vshrl.u32 %v348, 7
        %v350 = vsub.s32 %v305, %v349
        %v351 = vrot.slane %v237, %v350
        %v352 = vsel %vm310, %v351, %v347
        %v353 = vlaneseq
        %v354 = vshrl.u32 %v353, 7
        %v355 = vsub.s32 %v312, %v354
        %v356 = vrot.slane %v239, %v355
        %v357 = vsel %vm317, %v356, %v352
        %vm358 = vcmask 1041409
        %v359 = vsel %vm358, %v357, %v318
        %vm360 = vcmask 523264
        %v361 = vsel %vm360, %v359, 0
        %363 = vmatprep.subr.mxu0 0.0
        %364 = vmatpush1.msra.mxu0 %v240
        %365 = vmatprep.subr.mxu0 0.0
        %366 = vmatpush1.msra.mxu0 %v241
        %367 = vmatprep.subr.mxu0 0.0
        %368 = vmatpush1.msra.mxu0 %v242
        %369 = vmatprep.subr.mxu0 0.0
        %370 = vmatpush1.msra.mxu0 %v243
        %371 = vmatprep.subr.mxu0 0.0
        %372 = vmatpush1.msra.mxu0 %v244
        %373 = vmatprep.subr.mxu0 0.0
        %374 = vmatpush1.msra.mxu0 %v245
        %375 = vmatprep.subr.mxu0 0.0
        %376 = vmatpush1.msra.mxu0 %v246
        %377 = vmatprep.subr.mxu0 0.0
        %378 = vmatpush1.msra.mxu0 %v247
        %379 = vmatprep.subr.mxu0 0.0
        %380 = vmatpush1.msra.mxu0 0.0
        %381 = vmatprep.subr.mxu0 0.0
        %382 = vmatpush1.msra.mxu0 0.0
        %383 = vmatprep.subr.mxu0 0.0
        %384 = vmatpush1.msra.mxu0 0.0
        %385 = vmatprep.subr.mxu0 0.0
        %386 = vmatpush1.msra.mxu0 0.0
        %387 = vmatprep.subr.mxu0 0.0
        %388 = vmatpush1.msra.mxu0 0.0
        %389 = vmatprep.subr.mxu0 0.0
        %390 = vmatpush1.msra.mxu0 0.0
        %391 = vmatprep.subr.mxu0 0.0
        %392 = vmatpush1.msra.mxu0 0.0
        %393 = vmatprep.subr.mxu0 0.0
        %394 = vmatpush1.msra.mxu0 0.0
        %395 = vmatprep.subr.mxu0 0.0
        %396 = vmatpush1.msra.mxu0 0.0
        %397 = vmatprep.subr.mxu0 0.0
        %398 = vmatpush1.msra.mxu0 0.0
        %399 = vmatprep.subr.mxu0 0.0
        %400 = vmatpush1.msra.mxu0 0.0
        %401 = vmatprep.subr.mxu0 0.0
        %402 = vmatpush1.msra.mxu0 0.0
        %403 = vmatprep.subr.mxu0 0.0
        %404 = vmatpush1.msra.mxu0 0.0
        %405 = vmatprep.subr.mxu0 0.0
        %406 = vmatpush1.msra.mxu0 0.0
        %407 = vmatprep.subr.mxu0 0.0
        %408 = vmatpush1.msra.mxu0 0.0
        %409 = vmatprep.subr.mxu0 0.0
        %410 = vmatpush1.msra.mxu0 0.0
        %411 = vmatprep.subr.mxu0 0.0
        %412 = vmatpush1.msra.mxu0 0.0
        %413 = vmatprep.subr.mxu0 0.0
        %414 = vmatpush1.msra.mxu0 0.0
        %415 = vmatprep.subr.mxu0 0.0
        %416 = vmatpush1.msra.mxu0 0.0
        %417 = vmatprep.subr.mxu0 0.0
        %418 = vmatpush1.msra.mxu0 0.0
        %419 = vmatprep.subr.mxu0 0.0
        %420 = vmatpush1.msra.mxu0 0.0
        %421 = vmatprep.subr.mxu0 0.0
        %422 = vmatpush1.msra.mxu0 0.0
        %423 = vmatprep.subr.mxu0 0.0
        %424 = vmatpush1.msra.mxu0 0.0
        %425 = vmatprep.subr.mxu0 0.0
        %426 = vmatpush1.msra.mxu0 0.0
        %427 = vmatprep.mubr.f32.mxu0 0.0
        %428 = vmatmul.mubr.f32.gmra.mrb[0].mxu0 %v361
        %v429 = vpop.f32.mrb[0].mxu0
        %v430 = vadd.f32 0.0, %v429
        %v431 = vpop.f32.mrb[0].mxu0
        %432 = vdwg.mxu0
        %v433 = vmax.f32 %v430, 0.0
        %v434 = vld [vmem:[%s2] sm:$0xf]
        %vm435 = vcmask 31744
        %v437 = vsel %vm435, %v433, 0
        %vm439 = vcmask 1043456
        %v441 = vsel %vm439, %v434, 0
        %443 = vmatprep.subr.mxu0 0.0
        %444 = vmatpush1.msra.mxu0 %v441
        %445 = vmatprep.subr.mxu0 0.0
        %446 = vmatpush1.msra.mxu0 0.0
        %447 = vmatprep.subr.mxu0 0.0
        %448 = vmatpush1.msra.mxu0 0.0
        %449 = vmatprep.subr.mxu0 0.0
        %450 = vmatpush1.msra.mxu0 0.0
        %451 = vmatprep.subr.mxu0 0.0
        %452 = vmatpush1.msra.mxu0 0.0
        %453 = vmatprep.subr.mxu0 0.0
        %454 = vmatpush1.msra.mxu0 0.0
        %455 = vmatprep.subr.mxu0 0.0
        %456 = vmatpush1.msra.mxu0 0.0
        %457 = vmatprep.subr.mxu0 0.0
        %458 = vmatpush1.msra.mxu0 0.0
        %459 = vmatprep.subr.mxu0 0.0
        %460 = vmatpush1.msra.mxu0 0.0
        %461 = vmatprep.subr.mxu0 0.0
        %462 = vmatpush1.msra.mxu0 0.0
        %463 = vmatprep.subr.mxu0 0.0
        %464 = vmatpush1.msra.mxu0 0.0
        %465 = vmatprep.subr.mxu0 0.0
        %466 = vmatpush1.msra.mxu0 0.0
        %467 = vmatprep.subr.mxu0 0.0
        %468 = vmatpush1.msra.mxu0 0.0
        %469 = vmatprep.subr.mxu0 0.0
        %470 = vmatpush1.msra.mxu0 0.0
        %471 = vmatprep.subr.mxu0 0.0
        %472 = vmatpush1.msra.mxu0 0.0
        %473 = vmatprep.subr.mxu0 0.0
        %474 = vmatpush1.msra.mxu0 0.0
        %475 = vmatprep.subr.mxu0 0.0
        %476 = vmatpush1.msra.mxu0 0.0
        %477 = vmatprep.subr.mxu0 0.0
        %478 = vmatpush1.msra.mxu0 0.0
        %479 = vmatprep.subr.mxu0 0.0
        %480 = vmatpush1.msra.mxu0 0.0
        %481 = vmatprep.subr.mxu0 0.0
        %482 = vmatpush1.msra.mxu0 0.0
        %483 = vmatprep.subr.mxu0 0.0
        %484 = vmatpush1.msra.mxu0 0.0
        %485 = vmatprep.subr.mxu0 0.0
        %486 = vmatpush1.msra.mxu0 0.0
        %487 = vmatprep.subr.mxu0 0.0
        %488 = vmatpush1.msra.mxu0 0.0
        %489 = vmatprep.subr.mxu0 0.0
        %490 = vmatpush1.msra.mxu0 0.0
        %491 = vmatprep.subr.mxu0 0.0
        %492 = vmatpush1.msra.mxu0 0.0
        %493 = vmatprep.subr.mxu0 0.0
        %494 = vmatpush1.msra.mxu0 0.0
        %495 = vmatprep.subr.mxu0 0.0
        %496 = vmatpush1.msra.mxu0 0.0
        %497 = vmatprep.subr.mxu0 0.0
        %498 = vmatpush1.msra.mxu0 0.0
        %499 = vmatprep.subr.mxu0 0.0
        %500 = vmatpush1.msra.mxu0 0.0
        %501 = vmatprep.subr.mxu0 0.0
        %502 = vmatpush1.msra.mxu0 0.0
        %503 = vmatprep.subr.mxu0 0.0
        %504 = vmatpush1.msra.mxu0 0.0
        %505 = vmatprep.subr.mxu0 0.0
        %506 = vmatpush1.msra.mxu0 0.0
        %507 = vmatprep.mubr.f32.mxu0 0.0
        %508 = vmatmul.mubr.f32.gmra.mrb[0].mxu0 %v437
        %v509 = vpop.f32.mrb[0].mxu0
        %v510 = vadd.f32 0.0, %v509
        %v511 = vpop.f32.mrb[0].mxu0
        %512 = vdwg.mxu0
        %v513 = vxor.u32 %v510, 2147483648
        %v514 = vmul.f32 %v513, 1.442695
        %v515 = vpow.pop %v514
        %v516 = vadd.f32 %v515, 1.0
        %v517 = vrcp.pop %v516
        %v518 = vmul.f32 1.0, %v517
        %v519 = vlaneseq
        %v520 = vshrl.u32 %v519, 7
        %v521 = vsub.s32 0, %v520
        %v522 = vrot.slane %v518, %v521
        %524 = vbcast.lane.b32.xlu0 %v522, 256
        %v525 = vpop.permute.xlu0 %524
        %s527 = sor.u32 256, 8
        %528 = vbcast.lane.b32.xlu0 %v522, %s527
        %v529 = vpop.permute.xlu0 %528
        %s531 = sor.u32 256, 16
        %532 = vbcast.lane.b32.xlu0 %v522, %s531
        %v533 = vpop.permute.xlu0 %532
        %s535 = sor.u32 256, 24
        %536 = vbcast.lane.b32.xlu0 %v522, %s535
        %v537 = vpop.permute.xlu0 %536
        %s539 = sor.u32 256, 32
        %540 = vbcast.lane.b32.xlu0 %v522, %s539
        %v541 = vpop.permute.xlu0 %540
        %s543 = sor.u32 256, 40
        %544 = vbcast.lane.b32.xlu0 %v522, %s543
        %v545 = vpop.permute.xlu0 %544
        %s547 = sor.u32 256, 48
        %548 = vbcast.lane.b32.xlu0 %v522, %s547
        %v549 = vpop.permute.xlu0 %548
        %s551 = sor.u32 256, 56
        %552 = vbcast.lane.b32.xlu0 %v522, %s551
        %v553 = vpop.permute.xlu0 %552
        %v554 = vlaneseq
        %v555 = vshrl.u32 %v554, 7
        %v556 = vsub.s32 1, %v555
        %v557 = vrot.slane %v518, %v556
        %559 = vbcast.lane.b32.xlu0 %v557, 256
        %v560 = vpop.permute.xlu0 %559
        %s562 = sor.u32 256, 8
        %563 = vbcast.lane.b32.xlu0 %v557, %s562
        %v564 = vpop.permute.xlu0 %563
        %s566 = sor.u32 256, 16
        %567 = vbcast.lane.b32.xlu0 %v557, %s566
        %v568 = vpop.permute.xlu0 %567
        %s570 = sor.u32 256, 24
        %571 = vbcast.lane.b32.xlu0 %v557, %s570
        %v572 = vpop.permute.xlu0 %571
        %s574 = sor.u32 256, 32
        %575 = vbcast.lane.b32.xlu0 %v557, %s574
        %v576 = vpop.permute.xlu0 %575
        %s578 = sor.u32 256, 40
        %579 = vbcast.lane.b32.xlu0 %v557, %s578
        %v580 = vpop.permute.xlu0 %579
        %s582 = sor.u32 256, 48
        %583 = vbcast.lane.b32.xlu0 %v557, %s582
        %v584 = vpop.permute.xlu0 %583
        %s586 = sor.u32 256, 56
        %587 = vbcast.lane.b32.xlu0 %v557, %s586
        %v588 = vpop.permute.xlu0 %587
        %v589 = vmul.f32 %v192, %v525
        %v590 = vmul.f32 %v193, %v529
        %v591 = vmul.f32 %v194, %v533
        %v592 = vmul.f32 %v195, %v537
        %v593 = vmul.f32 %v196, %v541
        %v594 = vmul.f32 %v197, %v545
        %v595 = vmul.f32 %v198, %v549
        %v596 = vmul.f32 %v199, %v553
        %v597 = vmul.f32 %v200, %v560
        %v598 = vmul.f32 %v201, %v564
        %v599 = vmul.f32 %v202, %v568
        %v600 = vmul.f32 %v203, %v572
        %v601 = vmul.f32 %v204, %v576
        %v602 = vmul.f32 %v205, %v580
        %v603 = vmul.f32 %v206, %v584
        %v604 = vmul.f32 %v207, %v588
        %605 = vst [vmem:[%s189] sm:$0xff] %v589
        %606 = vst [vmem:[%s189 + $0x8] sm:$0xff] %v590
        %607 = vst [vmem:[%s189 + $0x10] sm:$0xff] %v591
        %608 = vst [vmem:[%s189 + $0x18] sm:$0xff] %v592
        %609 = vst [vmem:[%s189 + $0x20] sm:$0xff] %v593
        %610 = vst [vmem:[%s189 + $0x28] sm:$0xff] %v594
        %611 = vst [vmem:[%s189 + $0x30] sm:$0xff] %v595
        %612 = vst [vmem:[%s189 + $0x38] sm:$0xff] %v596
        %613 = vst [vmem:[%s189 + $0x40] sm:$0xff] %v597
        %614 = vst [vmem:[%s189 + $0x48] sm:$0xff] %v598
        %615 = vst [vmem:[%s189 + $0x50] sm:$0xff] %v599
        %616 = vst [vmem:[%s189 + $0x58] sm:$0xff] %v600
        %617 = vst [vmem:[%s189 + $0x60] sm:$0xff] %v601
        %618 = vst [vmem:[%s189 + $0x68] sm:$0xff] %v602
        %619 = vst [vmem:[%s189 + $0x70] sm:$0xff] %v603
        %620 = vst [vmem:[%s189 + $0x78] sm:$0xff] %v604
        %s621 = sand.u32 %s96, 1
        %s622 = scalar_lea.sflag [#allocation4], %s621
        %s623 = sand.u32 %s96, 1
        %s624 = smul.addr %s623, 128
        %s625 = scalar_lea.vmem [#allocation5], %s624
        // Predicated region
        $region37: #{se_block.1} parent=31 // pred_check
          %p626 = pneg %p106
        $region38: #{se_block.1} parent=31 // pred_check_branch
          %628 = sbr.rel (%p626) target = $region40
        $region39: #{se_block.1} parent=31 // pred_region
          %s629 = smul.u32 2, %s20
          %s631 = ssub.s32 2048, 2048
          %632 = vsyncadd %s622, %s631
          %s633 = smul.addr %s629, 8
          %s634 = smul.addr %s633, 128
          %s635 = scalar_lea.hbm %s3, %s634
          %s636 = sshll.u32 %s625, 4
          %s637 = int_to_ptr.vmem [resolvable:$true] %s636
          %642 = dma.vmem_to_hbm [thread:$0]  %s637, 2048, %s635, %s622, 128, 128, 8
        $region40: #{se_block.1} parent=31 // pred_fallthru
          _
      $region32: #{se_block.1} parent=5 // pred_fallthru
        _
      %p643 = scmp.le.s32.totalorder 2, %s15
      // Predicated region
      $region41: #{se_block.1} parent=5 // pred_check
        %p644 = pneg %p643
      $region42: #{se_block.1} parent=5 // pred_check_branch
        %646 = sbr.rel (%p644) target = $region44
      $region43: #{se_block.1} parent=5 // pred_region
        %s647 = ssub.s32 %s15, 2
        // Predicated region
        $region45: #{se_block.1} parent=43 // pred_check
          %p648 = pneg %p112
        $region46: #{se_block.1} parent=43 // pred_check_branch
          %650 = sbr.rel (%p648) target = $region48
        $region47: #{se_block.1} parent=43 // pred_region
          %s651 = sand.u32 %s97, 1
          %s652 = scalar_lea.sflag [#allocation4], %s651
          %s653 = sand.u32 %s97, 1
          %s654 = smul.addr %s653, 128
          %s655 = scalar_lea.vmem [#allocation5], %s654
          %656 = dma.done %s652, 2048
        $region48: #{se_block.1} parent=43 // pred_fallthru
          _
      $region44: #{se_block.1} parent=5 // pred_fallthru
        _
    $region6: #{se_block.1} parent=1 // loop_footer
      %s19 = sadd.s32 1, %s15
    $region7: #{se_block.1} parent=1 // loop_footer_branch
      %14 = sbr.rel target = $region3
    $region8: #{se_block.1} parent=1 // loop_exit
      _
    %657 = vsyncpa [#allocation3], 1
    %s658 = scalar_lea.sflag [#allocation3], 1
    %659 = vsyncpa %s658, 1
    %660 = vsyncpa [#allocation4], 1
    %s661 = scalar_lea.sflag [#allocation4], 1
    %662 = vsyncpa %s661, 1

</llo_original>
